<compile_context>
chip_gen: v6e
topology: v6e:2x2x1
jax: 0.10.0
libtpu: 0.0.40
codegen_flags: <defaults>
</compile_context>

<pallas_src>
import functools

import jax
import jax.numpy as jnp
from jax.experimental import pallas as pl
from jax.experimental.pallas import tpu as pltpu


# ---------------------------------------------------------------------------
# Hardware probing (conservative fallbacks if the query is unavailable).
# ---------------------------------------------------------------------------
@functools.lru_cache(maxsize=None)
def _vmem_capacity_bytes():
    try:
        return int(pltpu.get_tpu_info().vmem_capacity_bytes)
    except Exception:
        return 64 << 20            # conservative: v7x per-TC VMEM


@functools.lru_cache(maxsize=None)
def _num_tensorcores():
    try:
        info = pltpu.get_tpu_info()
        for name in ("num_cores", "core_count", "num_tensorcores",
                     "tensorcores_per_chip"):
            v = getattr(info, name, None)
            if v:
                return int(v)
    except Exception:
        pass
    try:
        return int(getattr(jax.local_devices()[0], "num_cores", 1) or 1)
    except Exception:
        return 1


# ---------------------------------------------------------------------------
# Kernels
# ---------------------------------------------------------------------------
def _se_fused_kernel(x_ref, w1t_ref, w2t_ref, o_ref):
    """One grid step = a block of whole samples: (bn, C, HW)."""
    x = x_ref[...]
    inv_hw = 1.0 / x.shape[2]
    # Global average pool with f32 accumulation (no full-slab f32 copy kept).
    pooled = jnp.sum(x, axis=2, dtype=jnp.float32) * inv_hw            # (bn, C)
    hidden = jnp.maximum(
        jnp.dot(pooled, w1t_ref[...], preferred_element_type=jnp.float32), 0.0)
    scale = jax.nn.sigmoid(
        jnp.dot(hidden, w2t_ref[...], preferred_element_type=jnp.float32))
    o_ref[...] = x * scale.astype(o_ref.dtype)[:, :, None]


def _pool_kernel(x_ref, pooled_ref):
    """Channel-tiled global average pool: (1, c_blk, HW) -> (1, c_blk, 1)."""
    x = x_ref[...]
    pooled_ref[...] = (jnp.sum(x, axis=2, keepdims=True, dtype=jnp.float32)
                       * (1.0 / x.shape[2]))


def _scale_kernel(x_ref, s_ref, o_ref):
    """Channel-tiled broadcast multiply: (1, c_blk, HW) * (1, c_blk, 1)."""
    o_ref[...] = x_ref[...] * s_ref[...]


# ---------------------------------------------------------------------------
# Block planning
# ---------------------------------------------------------------------------
def _pick_bn(n, per_sample_bytes, target_bytes, multi_core):
    """Samples per fused grid step."""
    budget = max(1, min(n, target_bytes // max(per_sample_bytes, 1)))
    if multi_core and n >= 2:
        budget = min(budget, max(1, n // 2))       # >= 2 grid steps for 2 TCs
    # Prefer an exact divisor near the budget (no ragged last block);
    # otherwise accept a partial OOB-masked last block rather than bn=1.
    div = next((b for b in range(budget, 0, -1) if n % b == 0), 1)
    bn = div if 4 * div >= 3 * budget else budget
    if multi_core:                                  # nudge toward even steps
        steps = pl.cdiv(n, bn)
        if steps > 1 and steps % 2:
            alt = pl.cdiv(n, steps + 1)
            if 8 * alt >= 7 * bn:
                bn = alt
    return max(1, bn)


# ---------------------------------------------------------------------------
# Public wrapper
# ---------------------------------------------------------------------------
def se_module(x_nchw, w1, w2, *, in_place=False,
              _target_bytes=None, _force_split=False):
    """SE forward.  x_nchw: (N, C, H, W); w1: (C_red, C); w2: (C, C_red)."""
    N, C, H, W = x_nchw.shape
    HW = H * W
    itemsize = x_nchw.dtype.itemsize
    dtype = x_nchw.dtype

    vmem_cap = _vmem_capacity_bytes()
    multi_core = _num_tensorcores() > 1
    target_bytes = _target_bytes or max(4 << 20, vmem_cap // 16)
    vmem_ceiling = (vmem_cap * 3) // 4              # headroom for Mosaic

    x = x_nchw.reshape(N, C, HW)                    # layout-free collapse
    per_sample_bytes = C * HW * itemsize
    # f32 weights, transposed so the kernel does row-major (bn,C)@(C,Cr).
    w1t = w1.T.astype(jnp.float32)                  # (C, C_red)
    w2t = w2.T.astype(jnp.float32)                  # (C_red, C)
    weight_bytes = 4 * (w1t.size + w2t.size) * 4    # double-buffered + pad

    fused_bn1_need = 4 * per_sample_bytes + weight_bytes + (2 << 20)
    use_fused = (not _force_split) and (
        per_sample_bytes <= target_bytes
        or C <= 8                                   # nothing to tile on C
        or fused_bn1_need <= vmem_ceiling)          # big sample still fits
                                                    # (128 MiB v5e/v6e VMEM)

    if use_fused:
        bn = (_pick_bn(N, per_sample_bytes, target_bytes, multi_core)
              if per_sample_bytes <= target_bytes else 1)
        steps = pl.cdiv(N, bn)
        block = (bn, C, HW)
        need = 4 * bn * per_sample_bytes + weight_bytes + (2 << 20)
        # TODO(synk): a sample too large even for a bn=1 block on this chip
        # (and with C<=8 so the channel-tiled path can't help) would need
        # spatial (HW) tiling with masked accumulation; not implemented.
        vmem_limit = int(min(max(need, 16 << 20), vmem_ceiling))
        out = pl.pallas_call(
            _se_fused_kernel,
            out_shape=jax.ShapeDtypeStruct(x.shape, dtype),
            grid_spec=pltpu.PrefetchScalarGridSpec(
                num_scalar_prefetch=0,
                grid=(steps,),
                in_specs=[
                    pl.BlockSpec(block, lambda n: (n, 0, 0)),
                    pl.BlockSpec(w1t.shape, lambda n: (0, 0)),
                    pl.BlockSpec(w2t.shape, lambda n: (0, 0)),
                ],
                out_specs=pl.BlockSpec(block, lambda n: (n, 0, 0)),
            ),
            compiler_params=pltpu.CompilerParams(
                dimension_semantics=("parallel",),
                vmem_limit_bytes=vmem_limit),
            input_output_aliases=({0: 0} if in_place else {}),
        )(x, w1t, w2t)
        return out.reshape(N, C, H, W)

    # -------- two-phase, channel-tiled path (samples too big for fused) ----
    row_bytes = HW * itemsize
    c_blk = max(8, (target_bytes // max(row_bytes, 1)) // 8 * 8)
    c_blk = min(c_blk, pl.cdiv(C, 8) * 8)
    c_steps = pl.cdiv(C, c_blk)
    x_block = (1, c_blk, HW)
    split_limit = int(min(max(4 * c_blk * row_bytes + (2 << 20), 16 << 20),
                          vmem_ceiling))

    # Phase 1: streaming global average pool with f32 accumulation.
    pooled = pl.pallas_call(
        _pool_kernel,
        out_shape=jax.ShapeDtypeStruct((N, C, 1), jnp.float32),
        grid_spec=pltpu.PrefetchScalarGridSpec(
            num_scalar_prefetch=0,
            grid=(N, c_steps),
            in_specs=[pl.BlockSpec(x_block, lambda n, c: (n, c, 0))],
            out_specs=pl.BlockSpec((1, c_blk, 1), lambda n, c: (n, c, 0)),
        ),
        compiler_params=pltpu.CompilerParams(
            dimension_semantics=("parallel", "parallel"),
            vmem_limit_bytes=split_limit),
    )(x)

    # Phase 2: tiny excitation FCs on (N, C) — negligible vs streaming x.
    p = pooled[..., 0]                                          # (N, C) f32
    hidden = jnp.maximum(jnp.dot(p, w1t, preferred_element_type=jnp.float32),
                         0.0)
    scale = jax.nn.sigmoid(jnp.dot(hidden, w2t,
                                   preferred_element_type=jnp.float32))
    scale = scale.astype(dtype)[..., None]                      # (N, C, 1)

    # Phase 3: streaming broadcast multiply.
    out = pl.pallas_call(
        _scale_kernel,
        out_shape=jax.ShapeDtypeStruct(x.shape, dtype),
        grid_spec=pltpu.PrefetchScalarGridSpec(
            num_scalar_prefetch=0,
            grid=(N, c_steps),
            in_specs=[
                pl.BlockSpec(x_block, lambda n, c: (n, c, 0)),
                pl.BlockSpec((1, c_blk, 1), lambda n, c: (n, c, 0)),
            ],
            out_specs=pl.BlockSpec(x_block, lambda n, c: (n, c, 0)),
        ),
        compiler_params=pltpu.CompilerParams(
            dimension_semantics=("parallel", "parallel"),
            vmem_limit_bytes=split_limit),
        input_output_aliases=({0: 0} if in_place else {}),
    )(x, scale)
    return out.reshape(N, C, H, W)


# ---------------------------------------------------------------------------
# Reference + self-test
# ---------------------------------------------------------------------------
def _xavier_uniform(key, out_ch, in_ch, dtype=jnp.float32):
    bound = (6.0 / (in_ch + out_ch)) ** 0.5
    return jax.random.uniform(key, (out_ch, in_ch), dtype=dtype,
                              minval=-bound, maxval=bound)


def _reference(x, w1, w2):
    pooled = jnp.mean(x.astype(jnp.float32), axis=(2, 3))        # (N, C)
    h = jnp.maximum(pooled @ w1.T.astype(jnp.float32), 0.0)      # (N, C_red)
    s = jax.nn.sigmoid(h @ w2.T.astype(jnp.float32))             # (N, C)
    return x * s.astype(x.dtype)[:, :, None, None]


if __name__ == "__main__":
    master_key = jax.random.PRNGKey(0)

    def run_case(n, c, h, w, reduction, dtype=jnp.float32, **kw):
        kx, k1, k2 = jax.random.split(
            jax.random.fold_in(master_key, n * 1000 + c), 3)
        c_red = max(1, c // reduction)
        x = jax.random.normal(kx, (n, c, h, w), dtype=dtype)
        w1 = _xavier_uniform(k1, c_red, c)      # fc1 (1x1 conv squeezed)
        w2 = _xavier_uniform(k2, c, c_red)      # fc2
        out = se_module(x, w1, w2, **kw)
        jax.block_until_ready(out)
        ref = _reference(x, w1, w2)
        assert out.shape == ref.shape, f"shape mismatch {(n, c, h, w)}"
        bf16 = dtype == jnp.bfloat16
        assert jnp.allclose(out.astype(jnp.float32), ref.astype(jnp.float32),
                            atol=1e-2 if bf16 else 1e-5,
                            rtol=2e-2 if bf16 else 1e-5), (
            f"mismatch for case {(n, c, h, w, dtype)}")

    # Primary small case (fused path).
    run_case(2, 4, 16, 16, reduction=2)
    # Ragged batch -> partial (OOB-masked) last block on the fused path.
    run_case(5, 8, 8, 8, reduction=2, _target_bytes=4096)
    # Channel-tiled two-phase path (forced small VMEM budget).
    run_case(3, 16, 8, 8, reduction=4, _force_split=True, _target_bytes=2048)
    # bf16 input on the fused path.
    run_case(2, 8, 16, 16, reduction=2, dtype=jnp.bfloat16)

    print("KERNEL_OK")
</pallas_src>

<mosaic_0001>
module attributes {stable_mosaic.version = 11 : i64} {
  func.func @_se_fused_kernel(%arg0: i32, %arg1: memref<2x4x256xf32, #tpu.memory_space<vmem>>, %arg2: memref<4x2xf32, #tpu.memory_space<vmem>>, %arg3: memref<2x4xf32, #tpu.memory_space<vmem>>, %arg4: memref<2x4x256xf32, #tpu.memory_space<vmem>>) attributes {dimension_semantics = [#tpu.dimension_semantics<parallel>], iteration_bounds = array<i64: 1>, scalar_prefetch = 0 : i64, scratch_operands = 0 : i64, tpu.core_type = #tpu.core_type<tc>, window_params = [{transform_indices = @transform_0, window_bounds = array<i64: 2, 4, 256>}, {pipeline_mode = #tpu.pipeline_mode<synchronous>, transform_indices = @transform_1, window_bounds = array<i64: 4, 2>}, {pipeline_mode = #tpu.pipeline_mode<synchronous>, transform_indices = @transform_2, window_bounds = array<i64: 2, 4>}, {transform_indices = @transform_3, window_bounds = array<i64: 2, 4, 256>}]} {
    %c0 = arith.constant 0 : index
    %c0_0 = arith.constant 0 : index
    %c0_1 = arith.constant 0 : index
    %0 = vector.load %arg1[%c0, %c0_0, %c0_1] : memref<2x4x256xf32, #tpu.memory_space<vmem>>, vector<2x4x256xf32>
    %cst = arith.constant dense<0.000000e+00> : vector<2x4xf32>
    %1 = vector.multi_reduction <add>, %0, %cst [2] : vector<2x4x256xf32> to vector<2x4xf32>
    %cst_2 = arith.constant 3.906250e-03 : f32
    %2 = vector.broadcast %cst_2 : f32 to vector<2x4xf32>
    %3 = arith.mulf %1, %2 : vector<2x4xf32>
    %c0_3 = arith.constant 0 : index
    %c0_4 = arith.constant 0 : index
    %4 = vector.load %arg2[%c0_3, %c0_4] : memref<4x2xf32, #tpu.memory_space<vmem>>, vector<4x2xf32>
    %cst_5 = arith.constant dense<0.000000e+00> : vector<2x2xf32>
    %5 = tpu.matmul %3, %4, %cst_5 {dimension_numbers = #tpu.dot_dimension_numbers<[1], [0], [0], [1], [0, 0, 1, 1], [], []>} : vector<2x4xf32>, vector<4x2xf32>, vector<2x2xf32> -> vector<2x2xf32>
    %cst_6 = arith.constant 0.000000e+00 : f32
    %6 = vector.broadcast %cst_6 : f32 to vector<2x2xf32>
    %7 = arith.maximumf %5, %6 : vector<2x2xf32>
    %c0_7 = arith.constant 0 : index
    %c0_8 = arith.constant 0 : index
    %8 = vector.load %arg3[%c0_7, %c0_8] : memref<2x4xf32, #tpu.memory_space<vmem>>, vector<2x4xf32>
    %cst_9 = arith.constant dense<0.000000e+00> : vector<2x4xf32>
    %9 = tpu.matmul %7, %8, %cst_9 {dimension_numbers = #tpu.dot_dimension_numbers<[1], [0], [0], [1], [0, 0, 1, 1], [], []>} : vector<2x2xf32>, vector<2x4xf32>, vector<2x4xf32> -> vector<2x4xf32>
    %10 = arith.negf %9 : vector<2x4xf32>
    %11 = math.exp %10 : vector<2x4xf32>
    %cst_10 = arith.constant 1.000000e+00 : f32
    %12 = vector.broadcast %cst_10 : f32 to vector<2x4xf32>
    %13 = arith.addf %12, %11 : vector<2x4xf32>
    %14 = arith.divf %12, %13 : vector<2x4xf32>
    %15 = vector.shape_cast %14 : vector<2x4xf32> to vector<2x4x1xf32>
    %16 = vector.broadcast %15 : vector<2x4x1xf32> to vector<2x4x256xf32>
    %17 = arith.mulf %0, %16 : vector<2x4x256xf32>
    %c0_11 = arith.constant 0 : index
    %c0_12 = arith.constant 0 : index
    %c0_13 = arith.constant 0 : index
    %18 = vector.load %arg4[%c0_11, %c0_12, %c0_13] : memref<2x4x256xf32, #tpu.memory_space<vmem>>, vector<2x4x256xf32>
    tpu.vector_store %arg4[%c0_11, %c0_12, %c0_13], %17 {strides = array<i32>} : memref<2x4x256xf32, #tpu.memory_space<vmem>>, vector<2x4x256xf32>,
    return
  }
  func.func @transform_0(%arg0: i32) -> (i32, i32, i32) {
    %c0_i32 = arith.constant 0 : i32
    %c0_i32_0 = arith.constant 0 : i32
    %c0_i32_1 = arith.constant 0 : i32
    return %arg0, %c0_i32, %c0_i32_0 : i32, i32, i32
  }
  func.func @transform_1(%arg0: i32) -> (i32, i32) {
    %c0_i32 = arith.constant 0 : i32
    %c0_i32_0 = arith.constant 0 : i32
    %c0_i32_1 = arith.constant 0 : i32
    return %c0_i32, %c0_i32_0 : i32, i32
  }
  func.func @transform_2(%arg0: i32) -> (i32, i32) {
    %c0_i32 = arith.constant 0 : i32
    %c0_i32_0 = arith.constant 0 : i32
    %c0_i32_1 = arith.constant 0 : i32
    return %c0_i32, %c0_i32_0 : i32, i32
  }
  func.func @transform_3(%arg0: i32) -> (i32, i32, i32) {
    %c0_i32 = arith.constant 0 : i32
    %c0_i32_0 = arith.constant 0 : i32
    %c0_i32_1 = arith.constant 0 : i32
    return %arg0, %c0_i32, %c0_i32_0 : i32, i32, i32
  }
}

</mosaic_0001>

<llo_original>
// kernel: tpu_custom_call.1
$region0: #{tpu_custom_call.1}
  #allocation0 [shape = 'u32[]', space=smem, size = 0x4, offset = 0x4, fixed_abs, tag = 'smem constant byte address 0x4 - core index']
  #allocation1 [shape = 'u32[144,128]{1,0:T(1,128)}', space=vmem, size = 0x12000, scoped, tag = 'internal scratch']
  %s0 = inlined_call_operand.hbm [shape: f32[2,4,256], index: 0, kind: input, shape index: {}]
  %s1 = inlined_call_operand.vmem [shape: f32[4,2], index: 1, kind: input, shape index: {}]
  %s2 = inlined_call_operand.vmem [shape: f32[2,4], index: 2, kind: input, shape index: {}]
  %s3 = inlined_call_operand.hbm [shape: f32[2,4,256], index: 3, kind: output, shape index: {}]
  %s4 = sld [smem:[#allocation0]]
  $region26: #{tpu_custom_call.1} parent=0
    _
  %s6 = ssub.s32 1, %s4
  %s7 = scalar_select 0, %s6, %s4
  $region1: #{tpu_custom_call.1} parent=0
    #allocation2 [shape = 'u8[8192]{0}', space=vmem, size = 0x2000, scoped, tag = 'input window, operand 0, single buffered']
    #allocation3 [shape = 's32[1]{0}', space=sflag, size = 0x4, scoped, tag = 'scoped memory for tpu_custom_call.1']
    #allocation4 [shape = 's32[1]{0}', space=sflag, size = 0x4, scoped, tag = 'scoped memory for tpu_custom_call.1']
    #allocation5 [shape = 'u8[8192]{0}', space=vmem, size = 0x2000, scoped, tag = 'output window, operand 0, single buffered']
    %8 = vsyncpa [#allocation3], 0
    %9 = vsyncpa [#allocation4], 0
    // Predicated region
    $region2: #{tpu_custom_call.1} parent=1 // pred_check
      _
    $region3: #{tpu_custom_call.1} parent=1 // pred_check_branch
      %11 = sbr.rel (0) target = $region5
    $region4: #{tpu_custom_call.1} parent=1 // pred_region
      %s13 = ssub.s32 256, 256
      %14 = vsyncadd [#allocation3], %s13
      %s15 = sshll.u32 [#allocation2], 4
      %s16 = int_to_ptr.vmem [resolvable:$true] %s15
      %21 = dma.hbm_to_vmem [thread:$0]  %s0, 256, %s16, [#allocation3], 128, 128, 8
    $region5: #{tpu_custom_call.1} parent=1 // pred_fallthru
      _
    // Predicated region
    $region6: #{tpu_custom_call.1} parent=1 // pred_check
      _
    $region7: #{tpu_custom_call.1} parent=1 // pred_check_branch
      %23 = sbr.rel (0) target = $region9
    $region8: #{tpu_custom_call.1} parent=1 // pred_region
      _
    $region9: #{tpu_custom_call.1} parent=1 // pred_fallthru
      _
    // Predicated region
    $region10: #{tpu_custom_call.1} parent=1 // pred_check
      _
    $region11: #{tpu_custom_call.1} parent=1 // pred_check_branch
      %25 = sbr.rel (0) target = $region13
    $region12: #{tpu_custom_call.1} parent=1 // pred_region
      _
    $region13: #{tpu_custom_call.1} parent=1 // pred_fallthru
      _
    // Predicated region
    $region14: #{tpu_custom_call.1} parent=1 // pred_check
      _
    $region15: #{tpu_custom_call.1} parent=1 // pred_check_branch
      %27 = sbr.rel (0) target = $region17
    $region16: #{tpu_custom_call.1} parent=1 // pred_region
      %28 = dma.done [#allocation3], 256
    $region17: #{tpu_custom_call.1} parent=1 // pred_fallthru
      _
    %v29 = vld [vmem:[#allocation2] sm:$0xff]
    %v30 = vld [vmem:[#allocation2 + $0x8] sm:$0xff]
    %v33 = vcombine.high %v29, %v29
    %v34 = vcombine.high %v30, %v30
    %vm37 = vcmask 1043456
    %v38 = vsel %vm37, %v29, 0.0
    %v39 = vsel %vm37, %v33, 0.0
    %v40 = vadd.f32 %v38, %v39
    %41 = vadd.xlane.f32.xlu0 %v40
    %v42 = vpop.xlane.xlu0 %41
    %v43 = vsel %vm37, %v30, 0.0
    %v44 = vsel %vm37, %v34, 0.0
    %v45 = vadd.f32 %v43, %v44
    %46 = vadd.xlane.f32.xlu0 %v45
    %v47 = vpop.xlane.xlu0 %46
    %v48 = vmul.f32 %v42, 0.00390625
    %v49 = vmul.f32 %v47, 0.00390625
    %v50 = vld [vmem:[%s1] sm:$0xf]
    %v53 = vlaneseq
    %v54 = vand.u32 %v53, 127
    %v55 = vlaneseq
    %v56 = vshrl.u32 %v55, 7
    %v57 = vsub.s32 %v54, %v56
    %v58 = vrot.slane %v48, %v57
    %v59 = vlaneseq
    %v60 = vshrl.u32 %v59, 7
    %v61 = vsub.s32 %v54, %v60
    %v62 = vrot.slane %v49, %v61
    %vm63 = vcmask 1041409
    %v64 = vsel %vm63, %v62, %v58
    %vm65 = vcmask 31744
    %v66 = vsel %vm65, %v64, 0
    %v69 = vsel %vm37, %v50, 0
    %71 = vmatprep.subr.mxu0 0.0
    %72 = vmatpush1.msra.mxu0 0.0
    %73 = vmatprep.subr.mxu0 0.0
    %74 = vmatpush1.msra.mxu0 0.0
    %75 = vmatprep.subr.mxu0 0.0
    %76 = vmatpush1.msra.mxu0 0.0
    %77 = vmatprep.subr.mxu0 0.0
    %78 = vmatpush1.msra.mxu0 0.0
    %79 = vmatprep.subr.mxu0 0.0
    %80 = vmatpush1.msra.mxu0 0.0
    %81 = vmatprep.subr.mxu0 0.0
    %82 = vmatpush1.msra.mxu0 0.0
    %83 = vmatprep.subr.mxu0 0.0
    %84 = vmatpush1.msra.mxu0 0.0
    %85 = vmatprep.subr.mxu0 0.0
    %86 = vmatpush1.msra.mxu0 0.0
    %87 = vmatprep.subr.mxu0 0.0
    %88 = vmatpush1.msra.mxu0 0.0
    %89 = vmatprep.subr.mxu0 0.0
    %90 = vmatpush1.msra.mxu0 0.0
    %91 = vmatprep.subr.mxu0 0.0
    %92 = vmatpush1.msra.mxu0 0.0
    %93 = vmatprep.subr.mxu0 0.0
    %94 = vmatpush1.msra.mxu0 0.0
    %95 = vmatprep.subr.mxu0 0.0
    %96 = vmatpush1.msra.mxu0 0.0
    %97 = vmatprep.subr.mxu0 0.0
    %98 = vmatpush1.msra.mxu0 0.0
    %99 = vmatprep.subr.mxu0 0.0
    %100 = vmatpush1.msra.mxu0 0.0
    %101 = vmatprep.subr.mxu0 0.0
    %102 = vmatpush1.msra.mxu0 %v69
    %103 = vmatprep.subr.mxu0 0.0
    %104 = vmatpush2.msra.mxu0 0.0
    %105 = vmatprep.subr.mxu0 0.0
    %106 = vmatpush2.msra.mxu0 0.0
    %107 = vmatprep.subr.mxu0 0.0
    %108 = vmatpush2.msra.mxu0 0.0
    %109 = vmatprep.subr.mxu0 0.0
    %110 = vmatpush2.msra.mxu0 0.0
    %111 = vmatprep.subr.mxu0 0.0
    %112 = vmatpush2.msra.mxu0 0.0
    %113 = vmatprep.subr.mxu0 0.0
    %114 = vmatpush2.msra.mxu0 0.0
    %115 = vmatprep.subr.mxu0 0.0
    %116 = vmatpush2.msra.mxu0 0.0
    %117 = vmatprep.subr.mxu0 0.0
    %118 = vmatpush2.msra.mxu0 0.0
    %119 = vmatprep.subr.mxu0 0.0
    %120 = vmatpush2.msra.mxu0 0.0
    %121 = vmatprep.subr.mxu0 0.0
    %122 = vmatpush2.msra.mxu0 0.0
    %123 = vmatprep.subr.mxu0 0.0
    %124 = vmatpush2.msra.mxu0 0.0
    %125 = vmatprep.subr.mxu0 0.0
    %126 = vmatpush2.msra.mxu0 0.0
    %127 = vmatprep.subr.mxu0 0.0
    %128 = vmatpush2.msra.mxu0 0.0
    %129 = vmatprep.subr.mxu0 0.0
    %130 = vmatpush2.msra.mxu0 0.0
    %131 = vmatprep.subr.mxu0 0.0
    %132 = vmatpush2.msra.mxu0 0.0
    %133 = vmatprep.subr.mxu0 0.0
    %134 = vmatpush2.msra.mxu0 0.0
    %135 = vmatprep.mubr.f32.mxu0 0.0
    %136 = vmatmul.mubr.f32.gmra.mxu0 %v66
    %v137 = vpop.f32.mrf.mxu0
    %v138 = vadd.f32 0.0, %v137
    %v139 = vpop.f32.mrf.mxu0
    %140 = vdwg.mxu0
    %v141 = vmax.f32 %v138, 0.0
    %v142 = vld [vmem:[%s2] sm:$0x3]
    %vm143 = vcmask 15360
    %v145 = vsel %vm143, %v141, 0
    %vm147 = vcmask 1041408
    %v149 = vsel %vm147, %v142, 0
    %151 = vmatprep.subr.mxu0 0.0
    %152 = vmatpush1.msra.mxu0 0.0
    %153 = vmatprep.subr.mxu0 0.0
    %154 = vmatpush1.msra.mxu0 0.0
    %155 = vmatprep.subr.mxu0 0.0
    %156 = vmatpush1.msra.mxu0 0.0
    %157 = vmatprep.subr.mxu0 0.0
    %158 = vmatpush1.msra.mxu0 0.0
    %159 = vmatprep.subr.mxu0 0.0
    %160 = vmatpush1.msra.mxu0 0.0
    %161 = vmatprep.subr.mxu0 0.0
    %162 = vmatpush1.msra.mxu0 0.0
    %163 = vmatprep.subr.mxu0 0.0
    %164 = vmatpush1.msra.mxu0 0.0
    %165 = vmatprep.subr.mxu0 0.0
    %166 = vmatpush1.msra.mxu0 0.0
    %167 = vmatprep.subr.mxu0 0.0
    %168 = vmatpush1.msra.mxu0 0.0
    %169 = vmatprep.subr.mxu0 0.0
    %170 = vmatpush1.msra.mxu0 0.0
    %171 = vmatprep.subr.mxu0 0.0
    %172 = vmatpush1.msra.mxu0 0.0
    %173 = vmatprep.subr.mxu0 0.0
    %174 = vmatpush1.msra.mxu0 0.0
    %175 = vmatprep.subr.mxu0 0.0
    %176 = vmatpush1.msra.mxu0 0.0
    %177 = vmatprep.subr.mxu0 0.0
    %178 = vmatpush1.msra.mxu0 0.0
    %179 = vmatprep.subr.mxu0 0.0
    %180 = vmatpush1.msra.mxu0 0.0
    %181 = vmatprep.subr.mxu0 0.0
    %182 = vmatpush1.msra.mxu0 %v149
    %183 = vmatprep.subr.mxu0 0.0
    %184 = vmatpush2.msra.mxu0 0.0
    %185 = vmatprep.subr.mxu0 0.0
    %186 = vmatpush2.msra.mxu0 0.0
    %187 = vmatprep.subr.mxu0 0.0
    %188 = vmatpush2.msra.mxu0 0.0
    %189 = vmatprep.subr.mxu0 0.0
    %190 = vmatpush2.msra.mxu0 0.0
    %191 = vmatprep.subr.mxu0 0.0
    %192 = vmatpush2.msra.mxu0 0.0
    %193 = vmatprep.subr.mxu0 0.0
    %194 = vmatpush2.msra.mxu0 0.0
    %195 = vmatprep.subr.mxu0 0.0
    %196 = vmatpush2.msra.mxu0 0.0
    %197 = vmatprep.subr.mxu0 0.0
    %198 = vmatpush2.msra.mxu0 0.0
    %199 = vmatprep.subr.mxu0 0.0
    %200 = vmatpush2.msra.mxu0 0.0
    %201 = vmatprep.subr.mxu0 0.0
    %202 = vmatpush2.msra.mxu0 0.0
    %203 = vmatprep.subr.mxu0 0.0
    %204 = vmatpush2.msra.mxu0 0.0
    %205 = vmatprep.subr.mxu0 0.0
    %206 = vmatpush2.msra.mxu0 0.0
    %207 = vmatprep.subr.mxu0 0.0
    %208 = vmatpush2.msra.mxu0 0.0
    %209 = vmatprep.subr.mxu0 0.0
    %210 = vmatpush2.msra.mxu0 0.0
    %211 = vmatprep.subr.mxu0 0.0
    %212 = vmatpush2.msra.mxu0 0.0
    %213 = vmatprep.subr.mxu0 0.0
    %214 = vmatpush2.msra.mxu0 0.0
    %215 = vmatprep.mubr.f32.mxu0 0.0
    %216 = vmatmul.mubr.f32.gmra.mxu0 %v145
    %v217 = vpop.f32.mrf.mxu0
    %v218 = vadd.f32 0.0, %v217
    %v219 = vpop.f32.mrf.mxu0
    %220 = vdwg.mxu0
    %v221 = vxor.u32 %v218, 2147483648
    %v222 = vmul.f32 %v221, 1.442695
    %v223 = vpow.pop %v222
    %v224 = vadd.f32 %v223, 1.0
    %v225 = vrcp.pop %v224
    %v226 = vmul.f32 1.0, %v225
    %v227 = vlaneseq
    %v228 = vshrl.u32 %v227, 7
    %v229 = vsub.s32 0, %v228
    %v230 = vrot.slane %v226, %v229
    %232 = vbcast.lane.b32.xlu0 %v230, 256
    %v233 = vpop.permute.xlu0 %232
    %v234 = vlaneseq
    %v235 = vshrl.u32 %v234, 7
    %v236 = vsub.s32 1, %v235
    %v237 = vrot.slane %v226, %v236
    %239 = vbcast.lane.b32.xlu0 %v237, 256
    %v240 = vpop.permute.xlu0 %239
    %v244 = vunpack.c.l.s4 839922192
    %v245 = vunpack.c.0.s8 %v244
    %v246 = vlaneseq
    %v247 = vshrl.u32 %v246, 7
    %v248 = vsub.s32 %v245, %v247
    %v249 = vrot.slane %v233, %v248
    %v251 = vunpack.c.l.s4 839922192
    %v252 = vunpack.c.0.s8 %v251
    %v253 = vlaneseq
    %v254 = vshrl.u32 %v253, 7
    %v255 = vsub.s32 %v252, %v254
    %v256 = vrot.slane %v240, %v255
    %v259 = vmul.f32 %v29, %v249
    %v260 = vmul.f32 %v30, %v256
    %261 = vst [vmem:[#allocation5] sm:$0xff] %v259
    %262 = vst [vmem:[#allocation5 + $0x8] sm:$0xff] %v260
    // Predicated region
    $region18: #{tpu_custom_call.1} parent=1 // pred_check
      _
    $region19: #{tpu_custom_call.1} parent=1 // pred_check_branch
      %264 = sbr.rel (0) target = $region21
    $region20: #{tpu_custom_call.1} parent=1 // pred_region
      %s266 = ssub.s32 256, 256
      %267 = vsyncadd [#allocation4], %s266
      %s268 = sshll.u32 [#allocation5], 4
      %s269 = int_to_ptr.vmem [resolvable:$true] %s268
      %274 = dma.vmem_to_hbm [thread:$0]  %s269, 256, %s3, [#allocation4], 128, 128, 8
    $region21: #{tpu_custom_call.1} parent=1 // pred_fallthru
      _
    // Predicated region
    $region22: #{tpu_custom_call.1} parent=1 // pred_check
      _
    $region23: #{tpu_custom_call.1} parent=1 // pred_check_branch
      %276 = sbr.rel (0) target = $region25
    $region24: #{tpu_custom_call.1} parent=1 // pred_region
      %277 = dma.done [#allocation4], 256
    $region25: #{tpu_custom_call.1} parent=1 // pred_fallthru
      _
    %278 = vsyncpa [#allocation3], 1
    %279 = vsyncpa [#allocation4], 1

</llo_original>
